<compile_context>
chip_gen: v6e
topology: v6e:2x2x1
jax: 0.10.0
libtpu: 0.0.40
codegen_flags: <defaults>
</compile_context>

<pallas_src>
import jax
import jax.numpy as jnp
from jax.experimental import pallas as pl
from jax.experimental.pallas import tpu as pltpu


def _round_up(x, m):
    return ((x + m - 1) // m) * m


def _cdiv(a, b):
    return (a + b - 1) // b


# ---------------------------------------------------------------------------
# Kernels
# ---------------------------------------------------------------------------

def _linear_kernel_2d(x_ref, wt_ref, o_ref):
    # x_ref: (tm, tk) f32 -> single astype to bf16 on the VPU, then MXU dot
    # with f32 accumulation. wt_ref: (tk, tn) bf16. o_ref: (tm, tn_out).
    res = jnp.dot(
        x_ref[...].astype(jnp.bfloat16),
        wt_ref[...],
        preferred_element_type=jnp.float32,
    )
    o_ref[...] = res[:, : o_ref.shape[-1]].astype(o_ref.dtype)


def _linear_kernel_3d(x_ref, wt_ref, o_ref, acc_ref):
    # K is blocked: accumulate into an f32 VMEM scratch; zero at k==0 and
    # store once at k==last (output block index is constant across k).
    k = pl.program_id(2)

    @pl.when(k == 0)
    def _():
        acc_ref[...] = jnp.zeros_like(acc_ref)

    acc_ref[...] += jnp.dot(
        x_ref[...].astype(jnp.bfloat16),
        wt_ref[...],
        preferred_element_type=jnp.float32,
    )

    @pl.when(k == pl.num_programs(2) - 1)
    def _():
        o_ref[...] = acc_ref[:, : o_ref.shape[-1]].astype(o_ref.dtype)


# ---------------------------------------------------------------------------
# Init-time weight prep (the weight is frozen -- do this exactly once)
# ---------------------------------------------------------------------------

def prepare_random_projection_weight(weight, *, lane_align=128):
    """Transpose + bf16 cast + lane pad of the frozen weight, once at init.

    weight: (out_features, in_features) float32, PyTorch layout.
    Returns (in_features, N_pad) bfloat16 with N_pad = round_up(out_features,
    lane_align). The forward pass never touches the weight in HBM again except
    to stream it through the kernel.
    """
    out_features, in_features = weight.shape
    wt = weight.T.astype(jnp.bfloat16)
    n_pad = _round_up(out_features, lane_align)
    if n_pad != out_features:
        wt = jnp.pad(wt, ((0, 0), (0, n_pad - out_features)))
    return wt


# ---------------------------------------------------------------------------
# Tile selection helpers
# ---------------------------------------------------------------------------

def _pick_tk(K, max_tk=2048):
    if K <= max_tk:
        return K
    for cand in (2048, 1536, 1280, 1024, 768, 640, 512, 384, 256):
        if cand <= max_tk and K % cand == 0:
            return cand
    # No aligned divisor: fall back to full K (partial K blocks would corrupt
    # the reduction, so we never split K unevenly).
    return K


def _shrink_tn(tn):
    half = tn // 2
    if half >= 256:
        return _round_up(half, 256)   # v6e/v7x MXU prefers 256-aligned columns
    return max(128, _round_up(half, 128))


def _vmem_bytes(tm, tk, tn, out_itemsize, use_acc):
    # Double-buffered input/output blocks + (optional) f32 accumulator scratch.
    b = 2 * (tm * tk * 4) + 2 * (tk * tn * 2) + 2 * (tm * tn * out_itemsize)
    if use_acc:
        b += tm * tn * 4
    return b


# ---------------------------------------------------------------------------
# Forward
# ---------------------------------------------------------------------------

def random_projection_forward(
    x,
    wt_prepared,
    out_features=None,
    *,
    out_dtype=jnp.float32,          # set jnp.bfloat16 if the consumer is bf16
    tm_max=256,                     # <=256 keeps >=2 row blocks for moderate M (v7x 2 TCs)
    vmem_budget_bytes=40 * 1024 * 1024,   # tile-selection budget, v7x(64 MiB)-safe
    vmem_limit_bytes=48 * 1024 * 1024,
):
    """y = x @ W.T (no bias). `wt_prepared` comes from
    prepare_random_projection_weight (shape (in_features, N_pad), bf16)."""
    M, K = x.shape
    Kw, N_pad = wt_prepared.shape
    assert K == Kw, "in_features mismatch"
    N = int(out_features) if out_features is not None else N_pad
    assert N <= N_pad

    out_itemsize = jnp.dtype(out_dtype).itemsize

    # ---- tile selection ----------------------------------------------------
    tk = _pick_tk(K)
    tm = M if M <= tm_max else tm_max          # full-dim block when M is small
    tn = N_pad
    use_acc = tk < K
    while tn > 128 and _vmem_bytes(tm, tk, tn, out_itemsize, use_acc) > vmem_budget_bytes:
        tn = _shrink_tn(tn)
    while tm > 8 and _vmem_bytes(tm, tk, tn, out_itemsize, use_acc) > vmem_budget_bytes:
        tm = max(8, _round_up(tm // 2, 8))

    gi = _cdiv(M, tm)
    gj = _cdiv(N, tn)
    gk = _cdiv(K, tk)

    # v7x megacore: guarantee >=2 blocks along some "parallel" axis when possible.
    if gi == 1 and gj == 1:
        if N_pad >= 256:
            tn = max(128, _round_up(N_pad // 2, 128))
            gj = _cdiv(N, tn)
        elif M >= 16:
            tm = _round_up(_cdiv(M, 2), 8)
            gi = _cdiv(M, tm)

    tn_out = min(tn, N)   # output block width (equals full dim N when gj == 1)

    x_bytes = M * K * 4
    w_bytes = K * N_pad * 2
    y_bytes = M * N * out_itemsize

    if gk == 1:
        # Pick the grid order so the larger stream is fetched exactly once:
        #   i-outer: x streamed once, weight re-fetched gi times (if gj > 1)
        #   j-outer: weight streamed once, x re-fetched gj times (if gi > 1)
        cost_i_outer = x_bytes + (gi if gj > 1 else 1) * w_bytes
        cost_j_outer = w_bytes + (gj if gi > 1 else 1) * x_bytes
        if cost_i_outer <= cost_j_outer:
            grid = (gi, gj)
            x_spec = pl.BlockSpec((tm, K), lambda i, j: (i, 0))
            w_spec = pl.BlockSpec((K, tn), lambda i, j: (0, j))
            o_spec = pl.BlockSpec((tm, tn_out), lambda i, j: (i, j))
            bytes_accessed = cost_i_outer + y_bytes
        else:
            grid = (gj, gi)
            x_spec = pl.BlockSpec((tm, K), lambda j, i: (i, 0))
            w_spec = pl.BlockSpec((K, tn), lambda j, i: (0, j))
            o_spec = pl.BlockSpec((tm, tn_out), lambda j, i: (i, j))
            bytes_accessed = cost_j_outer + y_bytes
        kernel = _linear_kernel_2d
        scratch_shapes = ()
        dim_sem = ("parallel", "parallel")
    else:
        grid = (gi, gj, gk)
        x_spec = pl.BlockSpec((tm, tk), lambda i, j, k: (i, k))
        w_spec = pl.BlockSpec((tk, tn), lambda i, j, k: (k, j))
        o_spec = pl.BlockSpec((tm, tn_out), lambda i, j, k: (i, j))
        kernel = _linear_kernel_3d
        scratch_shapes = (pltpu.VMEM((tm, tn), jnp.float32),)
        dim_sem = ("parallel", "parallel", "arbitrary")
        bytes_accessed = gj * x_bytes + gi * w_bytes + y_bytes

    cost = pl.CostEstimate(
        flops=2 * M * N_pad * K,
        transcendentals=0,
        bytes_accessed=bytes_accessed,
    )

    return pl.pallas_call(
        kernel,
        out_shape=jax.ShapeDtypeStruct((M, N), out_dtype),
        grid_spec=pltpu.PrefetchScalarGridSpec(
            num_scalar_prefetch=0,
            grid=grid,
            in_specs=[x_spec, w_spec],
            out_specs=o_spec,
            scratch_shapes=scratch_shapes,
        ),
        compiler_params=pltpu.CompilerParams(
            dimension_semantics=dim_sem,
            vmem_limit_bytes=vmem_limit_bytes,
        ),
        cost_estimate=cost,
    )(x, wt_prepared)


if __name__ == "__main__":
    key = jax.random.PRNGKey(0)
    k_x, k_w = jax.random.split(key)

    batch = 16
    in_features = 64
    out_features = 128

    # Deterministic parameter init matching reset_parameters(): normal(std=0.1)
    weight = 0.1 * jax.random.normal(
        k_w, (out_features, in_features), dtype=jnp.float32
    )
    x = jax.random.normal(k_x, (batch, in_features), dtype=jnp.float32)

    # Init-time (frozen weight): transpose + bf16 cast + lane pad exactly once.
    wt_prepped = prepare_random_projection_weight(weight)

    y = random_projection_forward(x, wt_prepped, out_features)
    y = jax.block_until_ready(y)

    assert y.shape == (batch, out_features)
    assert y.dtype == jnp.float32

    # Tight check vs. the same bf16-quantized operands with f32 accumulation.
    y_ref = jnp.dot(
        x.astype(jnp.bfloat16).astype(jnp.float32),
        weight.T.astype(jnp.bfloat16).astype(jnp.float32),
    )
    assert jnp.allclose(y, y_ref, atol=1e-3, rtol=1e-3), "mismatch vs bf16 reference"

    # Looser sanity check vs. full-f32 math.
    # TODO(synk): bf16 MXU operands deviate from PyTorch's f32 F.linear bit-for-bit;
    # an f32-operand variant could be offered for strict parity.
    y_f32 = x @ weight.T
    assert jnp.allclose(y, y_f32, atol=5e-2, rtol=5e-2), "mismatch vs f32 reference"

    print("KERNEL_OK")
</pallas_src>

<mosaic_0001>
module attributes {stable_mosaic.version = 11 : i64} {
  func.func @_linear_kernel_2d(%arg0: i32, %arg1: i32, %arg2: memref<8x64xf32, #tpu.memory_space<vmem>>, %arg3: memref<64x128xbf16, #tpu.memory_space<vmem>>, %arg4: memref<8x128xf32, #tpu.memory_space<vmem>>) attributes {dimension_semantics = [#tpu.dimension_semantics<parallel>, #tpu.dimension_semantics<parallel>], iteration_bounds = array<i64: 2, 1>, scalar_prefetch = 0 : i64, scratch_operands = 0 : i64, tpu.core_type = #tpu.core_type<tc>, window_params = [{transform_indices = @transform_0, window_bounds = array<i64: 8, 64>}, {transform_indices = @transform_1, window_bounds = array<i64: 64, 128>}, {transform_indices = @transform_2, window_bounds = array<i64: 8, 128>}]} {
    %c0 = arith.constant 0 : index
    %c0_0 = arith.constant 0 : index
    %0 = vector.load %arg2[%c0, %c0_0] : memref<8x64xf32, #tpu.memory_space<vmem>>, vector<8x64xf32>
    %1 = arith.truncf %0 : vector<8x64xf32> to vector<8x64xbf16>
    %c0_1 = arith.constant 0 : index
    %c0_2 = arith.constant 0 : index
    %2 = vector.load %arg3[%c0_1, %c0_2] : memref<64x128xbf16, #tpu.memory_space<vmem>>, vector<64x128xbf16>
    %cst = arith.constant dense<0.000000e+00> : vector<8x128xf32>
    %3 = tpu.matmul %1, %2, %cst {dimension_numbers = #tpu.dot_dimension_numbers<[1], [0], [0], [1], [0, 0, 1, 1], [], []>} : vector<8x64xbf16>, vector<64x128xbf16>, vector<8x128xf32> -> vector<8x128xf32>
    %c0_3 = arith.constant 0 : index
    %c0_4 = arith.constant 0 : index
    %4 = vector.load %arg4[%c0_3, %c0_4] : memref<8x128xf32, #tpu.memory_space<vmem>>, vector<8x128xf32>
    tpu.vector_store %arg4[%c0_3, %c0_4], %3 {strides = array<i32>} : memref<8x128xf32, #tpu.memory_space<vmem>>, vector<8x128xf32>,
    return
  }
  func.func @transform_0(%arg0: i32, %arg1: i32) -> (i32, i32) {
    %c0_i32 = arith.constant 0 : i32
    %c0_i32_0 = arith.constant 0 : i32
    return %arg0, %c0_i32 : i32, i32
  }
  func.func @transform_1(%arg0: i32, %arg1: i32) -> (i32, i32) {
    %c0_i32 = arith.constant 0 : i32
    %c0_i32_0 = arith.constant 0 : i32
    return %c0_i32, %arg1 : i32, i32
  }
  func.func @transform_2(%arg0: i32, %arg1: i32) -> (i32, i32) {
    %c0_i32 = arith.constant 0 : i32
    return %arg0, %arg1 : i32, i32
  }
}

</mosaic_0001>

<llo_original>
// kernel: tpu_custom_call.1
$region0: #{tpu_custom_call.1}
  #allocation0 [shape = 'u32[]', space=smem, size = 0x4, offset = 0x4, fixed_abs, tag = 'smem constant byte address 0x4 - core index']
  #allocation1 [shape = 'u32[144,128]{1,0:T(1,128)}', space=vmem, size = 0x12000, scoped, tag = 'internal scratch']
  %s0 = inlined_call_operand.hbm [shape: f32[16,64], index: 0, kind: input, shape index: {}]
  %s1 = inlined_call_operand.hbm [shape: bf16[64,128], index: 1, kind: input, shape index: {}]
  %s2 = inlined_call_operand.hbm [shape: f32[16,128], index: 2, kind: output, shape index: {}]
  %s3 = sld [smem:[#allocation0]]
  $region49: #{tpu_custom_call.1} parent=0
    _
  %s5 = ssub.s32 1, %s3
  %s6 = scalar_select 0, %s5, %s3
  $region1: #{tpu_custom_call.1} parent=0
    #allocation2 [shape = 'u8[8192]{0}', space=vmem, size = 0x2000, scoped, tag = 'input window, operand 0']
    #allocation3 [shape = 's32[2]{0}', space=sflag, size = 0x8, scoped, tag = 'scoped memory for tpu_custom_call.1']
    #allocation4 [shape = 's32[2]{0}', space=sflag, size = 0x8, scoped, tag = 'scoped memory for tpu_custom_call.1']
    #allocation5 [shape = 'u8[16384]{0}', space=vmem, size = 0x4000, scoped, tag = 'input window, operand 1, single buffered']
    #allocation6 [shape = 's32[1]{0}', space=sflag, size = 0x4, scoped, tag = 'scoped memory for tpu_custom_call.1']
    #allocation7 [shape = 'u8[8192]{0}', space=vmem, size = 0x2000, scoped, tag = 'output window, operand 0']
    %7 = vsyncpa [#allocation3], 0
    %s8 = scalar_lea.sflag [#allocation3], 1
    %9 = vsyncpa %s8, 0
    %10 = vsyncpa [#allocation6], 0
    %11 = vsyncpa [#allocation4], 0
    %s12 = scalar_lea.sflag [#allocation4], 1
    %13 = vsyncpa %s12, 0
    loop: start=0, step=1, limit=4
    $region2: #{tpu_custom_call.1} parent=1 // loop_pre_header
      _
    $region3: #{tpu_custom_call.1} parent=1 // loop_header
      %s15 = sphi 0, %s19
      %p16 = scmp.ge.s32.totalorder %s15, 4
      %s22 = sphi 0, %s34
      %s23 = sphi 0, %s30
      %s24 = sphi 0, %s22
      %s25 = sphi 0, %s23
      %s26 = sphi 0, %s24
      %s27 = sphi 0, %s25
      %s37 = sphi 0, %s39
      %s40 = sphi 0, %s37
      %s41 = sphi 0, %s40
      %s57 = sphi 0, %s41
      %s63 = sphi 0, %s65
      %s66 = sphi 0, %s63
      %s67 = sphi 0, %s66
      %s83 = sphi 0, %s67
      %s91 = sphi 0, %s93
      %s94 = sphi 0, %s91
      %s95 = sphi 0, %s94
      %s111 = sphi 0, %s95
    $region4: #{tpu_custom_call.1} parent=1 // loop_header_branch
      %18 = sbr.rel (%p16) target = $region8
    $region5: #{tpu_custom_call.1} parent=1 // loop_body
      %s20 = ssub.s32 %s15, 1
      %s21 = ssub.s32 %s15, 2
      %s28 = sadd.s32 1, %s23
      %p29 = scmp.ge.s32.totalorder %s28, 1
      %s30 = scalar_select %p29, 0, %s28
      %s31 = sadd.s32 1, %s22
      %s32 = scalar_select %p29, %s31, %s22
      %p33 = scmp.ge.s32.totalorder %s32, 2
      %s34 = scalar_select %p33, 0, %s32
      %s35 = ssub.s32 %s22, %s34
      %p36 = scmp.eq.s32.totalorder %s35, 0
      %s38 = sadd.s32 %s37, 1
      %s39 = scalar_select %p36, %s37, %s38
      %p42 = pneg %p36
      %p43 = scmp.eq.s32.totalorder %s15, 1
      %p44 = por %p42, %p43
      %p45 = scmp.ne.s32.totalorder %s37, %s40
      %p46 = scmp.eq.s32.totalorder %s15, 0
      %p47 = por %p45, %p46
      %p48 = scmp.ne.s32.totalorder %s37, %s40
      %p49 = scmp.eq.s32.totalorder %s20, 1
      %p50 = por %p48, %p49
      %p51 = scmp.ne.s32.totalorder %s40, %s41
      %p52 = scmp.eq.s32.totalorder %s20, 0
      %p53 = por %p51, %p52
      %p54 = scmp.ne.s32.totalorder %s40, %s41
      %p55 = scmp.eq.s32.totalorder %s21, 1
      %p56 = por %p54, %p55
      %p58 = scmp.ne.s32.totalorder %s41, %s57
      %p59 = scmp.eq.s32.totalorder %s21, 0
      %p60 = por %p58, %p59
      %s61 = ssub.s32 %s23, %s30
      %p62 = scmp.eq.s32.totalorder %s61, 0
      %s64 = sadd.s32 %s63, 1
      %s65 = scalar_select %p62, %s63, %s64
      %p68 = pneg %p62
      %p69 = scmp.eq.s32.totalorder %s15, 1
      %p70 = por %p68, %p69
      %p71 = scmp.ne.s32.totalorder %s63, %s66
      %p72 = scmp.eq.s32.totalorder %s15, 0
      %p73 = por %p71, %p72
      %p74 = scmp.ne.s32.totalorder %s63, %s66
      %p75 = scmp.eq.s32.totalorder %s20, 1
      %p76 = por %p74, %p75
      %p77 = scmp.ne.s32.totalorder %s66, %s67
      %p78 = scmp.eq.s32.totalorder %s20, 0
      %p79 = por %p77, %p78
      %p80 = scmp.ne.s32.totalorder %s66, %s67
      %p81 = scmp.eq.s32.totalorder %s21, 1
      %p82 = por %p80, %p81
      %p84 = scmp.ne.s32.totalorder %s67, %s83
      %p85 = scmp.eq.s32.totalorder %s21, 0
      %p86 = por %p84, %p85
      %s87 = ssub.s32 %s22, %s34
      %s88 = ssub.s32 %s23, %s30
      %s89 = sor.u32 %s87, %s88
      %p90 = scmp.eq.s32.totalorder %s89, 0
      %s92 = sadd.s32 %s91, 1
      %s93 = scalar_select %p90, %s91, %s92
      %p96 = pneg %p90
      %p97 = scmp.eq.s32.totalorder %s15, 1
      %p98 = por %p96, %p97
      %p99 = scmp.ne.s32.totalorder %s91, %s94
      %p100 = scmp.eq.s32.totalorder %s15, 0
      %p101 = por %p99, %p100
      %p102 = scmp.ne.s32.totalorder %s91, %s94
      %p103 = scmp.eq.s32.totalorder %s20, 1
      %p104 = por %p102, %p103
      %p105 = scmp.ne.s32.totalorder %s94, %s95
      %p106 = scmp.eq.s32.totalorder %s20, 0
      %p107 = por %p105, %p106
      %p108 = scmp.ne.s32.totalorder %s94, %s95
      %p109 = scmp.eq.s32.totalorder %s21, 1
      %p110 = por %p108, %p109
      %p112 = scmp.ne.s32.totalorder %s95, %s111
      %p113 = scmp.eq.s32.totalorder %s21, 0
      %p114 = por %p112, %p113
      %p115 = scmp.le.s32.totalorder 1, %s15
      %p116 = scmp.lt.s32.totalorder %s15, 3
      %p117 = pnand %p115, %p116
      %p118 = pneg %p117
      // Predicated region
      $region9: #{tpu_custom_call.1} parent=5 // pred_check
        _
      $region10: #{tpu_custom_call.1} parent=5 // pred_check_branch
        %120 = sbr.rel (%p117) target = $region12
      $region11: #{tpu_custom_call.1} parent=5 // pred_region
        %s121 = ssub.s32 %s15, 1
        // Predicated region
        $region13: #{tpu_custom_call.1} parent=11 // pred_check
          %p122 = pneg %p79
        $region14: #{tpu_custom_call.1} parent=11 // pred_check_branch
          %124 = sbr.rel (%p122) target = $region16
        $region15: #{tpu_custom_call.1} parent=11 // pred_region
          %s126 = ssub.s32 512, 512
          %127 = vsyncadd [#allocation6], %s126
          %s128 = smul.addr %s25, 64
          %s129 = scalar_lea.hbm %s1, %s128
          %s130 = sshll.u32 [#allocation5], 4
          %s131 = int_to_ptr.vmem [resolvable:$true] %s130
          %136 = dma.hbm_to_vmem [thread:$0]  %s129, 512, %s131, [#allocation6], 64, 64, 4
        $region16: #{tpu_custom_call.1} parent=11 // pred_fallthru
          _
      $region12: #{tpu_custom_call.1} parent=5 // pred_fallthru
        _
      %p137 = scmp.lt.s32.totalorder %s15, 2
      // Predicated region
      $region17: #{tpu_custom_call.1} parent=5 // pred_check
        %p138 = pneg %p137
      $region18: #{tpu_custom_call.1} parent=5 // pred_check_branch
        %140 = sbr.rel (%p138) target = $region20
      $region19: #{tpu_custom_call.1} parent=5 // pred_region
        // Predicated region
        $region21: #{tpu_custom_call.1} parent=19 // pred_check
          %p141 = pneg %p47
        $region22: #{tpu_custom_call.1} parent=19 // pred_check_branch
          %143 = sbr.rel (%p141) target = $region24
        $region23: #{tpu_custom_call.1} parent=19 // pred_region
          %s144 = sand.u32 %s37, 1
          %s145 = scalar_lea.sflag [#allocation3], %s144
          %s146 = sand.u32 %s37, 1
          %s147 = smul.addr %s146, 8
          %s148 = scalar_lea.vmem [#allocation2], %s147
          %s150 = ssub.s32 128, 128
          %151 = vsyncadd %s145, %s150
          %s152 = smul.addr %s22, 128
          %s153 = scalar_lea.hbm %s0, %s152
          %s155 = sshll.u32 %s148, 4
          %s156 = int_to_ptr.vmem [resolvable:$true] %s155
          %158 = dma.hbm_to_vmem [thread:$0]  %s153, 128, %s156, %s145
        $region24: #{tpu_custom_call.1} parent=19 // pred_fallthru
          _
      $region20: #{tpu_custom_call.1} parent=5 // pred_fallthru
        _
      %p159 = scmp.le.s32.totalorder 1, %s15
      %p160 = scmp.lt.s32.totalorder %s15, 3
      %p161 = pnand %p159, %p160
      %p162 = pneg %p161
      // Predicated region
      $region25: #{tpu_custom_call.1} parent=5 // pred_check
        _
      $region26: #{tpu_custom_call.1} parent=5 // pred_check_branch
        %164 = sbr.rel (%p161) target = $region28
      $region27: #{tpu_custom_call.1} parent=5 // pred_region
        %s165 = ssub.s32 %s15, 1
        %s166 = sand.u32 %s40, 1
        %s167 = scalar_lea.sflag [#allocation3], %s166
        %s168 = sand.u32 %s40, 1
        %s169 = smul.addr %s168, 8
        %s170 = scalar_lea.vmem [#allocation2], %s169
        // Predicated region
        $region29: #{tpu_custom_call.1} parent=27 // pred_check
          %p171 = pneg %p53
        $region30: #{tpu_custom_call.1} parent=27 // pred_check_branch
          %173 = sbr.rel (%p171) target = $region32
        $region31: #{tpu_custom_call.1} parent=27 // pred_region
          %174 = dma.done %s167, 128
        $region32: #{tpu_custom_call.1} parent=27 // pred_fallthru
          _
        // Predicated region
        $region33: #{tpu_custom_call.1} parent=27 // pred_check
          %p175 = pneg %p79
        $region34: #{tpu_custom_call.1} parent=27 // pred_check_branch
          %177 = sbr.rel (%p175) target = $region36
        $region35: #{tpu_custom_call.1} parent=27 // pred_region
          %178 = dma.done [#allocation6], 512
        $region36: #{tpu_custom_call.1} parent=27 // pred_fallthru
          _
        %s179 = sand.u32 %s40, 1
        %s180 = scalar_lea.sflag [#allocation3], %s179
        %s181 = sand.u32 %s40, 1
        %s182 = smul.addr %s181, 8
        %s183 = scalar_lea.vmem [#allocation2], %s182
        %p184 = pneg %p53
        %p185 = pneg %p50
        %p186 = pneg %p79
        %p187 = pneg %p76
        %p188 = pneg %p107
        %p189 = pneg %p104
        %s190 = sand.u32 %s94, 1
        %s191 = scalar_lea.sflag [#allocation4], %s190
        %s192 = sand.u32 %s94, 1
        %s193 = smul.addr %s192, 8
        %s194 = scalar_lea.vmem [#allocation7], %s193
        %v196 = vld [vmem:[%s170] sm:$0xff]
        %v197 = vpack.c.bf16 %v196, %v196
        %v198 = vld [vmem:[#allocation5] sm:$0xf]
        %v199 = vld [vmem:[#allocation5 + $0x4] sm:$0xf]
        %v200 = vld [vmem:[#allocation5 + $0x8] sm:$0xf]
        %v201 = vld [vmem:[#allocation5 + $0xc] sm:$0xf]
        %v202 = vld [vmem:[#allocation5 + $0x10] sm:$0xf]
        %v203 = vld [vmem:[#allocation5 + $0x14] sm:$0xf]
        %v204 = vld [vmem:[#allocation5 + $0x18] sm:$0xf]
        %v205 = vld [vmem:[#allocation5 + $0x1c] sm:$0xf]
        %v214 = vunpack.c.l.b16 %v198
        %v215 = vunpack.c.l.b16 %v199
        %v216 = vunpack.c.l.b16 %v200
        %v217 = vunpack.c.l.b16 %v201
        %v218 = vunpack.c.l.b16 %v202
        %v219 = vunpack.c.l.b16 %v203
        %v220 = vunpack.c.l.b16 %v204
        %v221 = vunpack.c.l.b16 %v205
        %v222 = vpack.c.b16 %v215, %v214
        %v223 = vpack.c.b16 %v217, %v216
        %v224 = vpack.c.b16 %v219, %v218
        %v225 = vpack.c.b16 %v221, %v220
        %vm230 = vcmask 523264
        %v232 = vsel %vm230, %v197, 0
        %234 = vmatprep.subr.bf16.mxu0 0
        %235 = vmatpush1.bf16.msra.mxu0 0
        %236 = vmatprep.subr.bf16.mxu0 0
        %237 = vmatpush1.bf16.msra.mxu0 0
        %238 = vmatprep.subr.bf16.mxu0 0
        %239 = vmatpush1.bf16.msra.mxu0 0
        %240 = vmatprep.subr.bf16.mxu0 0
        %241 = vmatpush1.bf16.msra.mxu0 0
        %242 = vmatprep.subr.bf16.mxu0 0
        %243 = vmatpush1.bf16.msra.mxu0 %v225
        %244 = vmatprep.subr.bf16.mxu0 0
        %245 = vmatpush1.bf16.msra.mxu0 %v224
        %246 = vmatprep.subr.bf16.mxu0 0
        %247 = vmatpush1.bf16.msra.mxu0 %v223
        %248 = vmatprep.subr.bf16.mxu0 0
        %249 = vmatpush1.bf16.msra.mxu0 %v222
        %250 = vmatprep.subr.bf16.mxu0 0
        %251 = vmatpush2.bf16.msra.mxu0 0
        %252 = vmatprep.subr.bf16.mxu0 0
        %253 = vmatpush2.bf16.msra.mxu0 0
        %254 = vmatprep.subr.bf16.mxu0 0
        %255 = vmatpush2.bf16.msra.mxu0 0
        %256 = vmatprep.subr.bf16.mxu0 0
        %257 = vmatpush2.bf16.msra.mxu0 0
        %258 = vmatprep.subr.bf16.mxu0 0
        %259 = vmatpush2.bf16.msra.mxu0 0
        %260 = vmatprep.subr.bf16.mxu0 0
        %261 = vmatpush2.bf16.msra.mxu0 0
        %262 = vmatprep.subr.bf16.mxu0 0
        %263 = vmatpush2.bf16.msra.mxu0 0
        %264 = vmatprep.subr.bf16.mxu0 0
        %265 = vmatpush2.bf16.msra.mxu0 0
        %266 = vmatprep.mubr.bf16.mxu0 0
        %267 = vmatmul.mubr.bf16.gmra.mxu0 %v232
        %v268 = vpop.f32.mrf.mxu0
        %v269 = vadd.f32 0.0, %v268
        %v270 = vpop.f32.mrf.mxu0
        %v271 = vpop.f32.mrf.mxu0
        %v272 = vpop.f32.mrf.mxu0
        %273 = vdwg.mxu0
        %274 = vst [vmem:[%s194] sm:$0xff] %v269
        %s275 = sand.u32 %s94, 1
        %s276 = scalar_lea.sflag [#allocation4], %s275
        %s277 = sand.u32 %s94, 1
        %s278 = smul.addr %s277, 8
        %s279 = scalar_lea.vmem [#allocation7], %s278
        // Predicated region
        $region37: #{tpu_custom_call.1} parent=27 // pred_check
          %p280 = pneg %p104
        $region38: #{tpu_custom_call.1} parent=27 // pred_check_branch
          %282 = sbr.rel (%p280) target = $region40
        $region39: #{tpu_custom_call.1} parent=27 // pred_region
          %s284 = ssub.s32 128, 128
          %285 = vsyncadd %s276, %s284
          %s286 = sadd.s32 %s25, %s24
          %s287 = smul.addr %s286, 128
          %s288 = scalar_lea.hbm %s2, %s287
          %s290 = sshll.u32 %s279, 4
          %s291 = int_to_ptr.vmem [resolvable:$true] %s290
          %293 = dma.vmem_to_hbm [thread:$0]  %s291, 128, %s288, %s276
        $region40: #{tpu_custom_call.1} parent=27 // pred_fallthru
          _
      $region28: #{tpu_custom_call.1} parent=5 // pred_fallthru
        _
      %p294 = scmp.le.s32.totalorder 2, %s15
      // Predicated region
      $region41: #{tpu_custom_call.1} parent=5 // pred_check
        %p295 = pneg %p294
      $region42: #{tpu_custom_call.1} parent=5 // pred_check_branch
        %297 = sbr.rel (%p295) target = $region44
      $region43: #{tpu_custom_call.1} parent=5 // pred_region
        %s298 = ssub.s32 %s15, 2
        // Predicated region
        $region45: #{tpu_custom_call.1} parent=43 // pred_check
          %p299 = pneg %p110
        $region46: #{tpu_custom_call.1} parent=43 // pred_check_branch
          %301 = sbr.rel (%p299) target = $region48
        $region47: #{tpu_custom_call.1} parent=43 // pred_region
          %s302 = sand.u32 %s95, 1
          %s303 = scalar_lea.sflag [#allocation4], %s302
          %s304 = sand.u32 %s95, 1
          %s305 = smul.addr %s304, 8
          %s306 = scalar_lea.vmem [#allocation7], %s305
          %307 = dma.done %s303, 128
        $region48: #{tpu_custom_call.1} parent=43 // pred_fallthru
          _
      $region44: #{tpu_custom_call.1} parent=5 // pred_fallthru
        _
    $region6: #{tpu_custom_call.1} parent=1 // loop_footer
      %s19 = sadd.s32 1, %s15
    $region7: #{tpu_custom_call.1} parent=1 // loop_footer_branch
      %14 = sbr.rel target = $region3
    $region8: #{tpu_custom_call.1} parent=1 // loop_exit
      _
    %308 = vsyncpa [#allocation3], 1
    %s309 = scalar_lea.sflag [#allocation3], 1
    %310 = vsyncpa %s309, 1
    %311 = vsyncpa [#allocation6], 1
    %312 = vsyncpa [#allocation4], 1
    %s313 = scalar_lea.sflag [#allocation4], 1
    %314 = vsyncpa %s313, 1

</llo_original>
